<compile_context>
chip_gen: v5e
topology: v5e:2x2
jax: 0.10.0
libtpu: 0.0.40
codegen_flags: <defaults>
</compile_context>

<pallas_src>
import functools

import numpy as np
import jax
import jax.numpy as jnp
from jax.experimental import pallas as pl
from jax.experimental.pallas import tpu as pltpu


def _vmem_capacity_bytes():
    """Physical VMEM per TensorCore; conservative (v7x) fallback if unknown."""
    try:
        info = pltpu.get_tpu_info()
        cap = getattr(info, "vmem_capacity_bytes", None)
        if cap:
            return int(cap)
    except Exception:
        pass
    return 64 * 1024 * 1024


def _share_self_attn_kernel(q_ref, kt_ref, v_ref,
                            wq_ref, bq_ref, wp_ref, bp_ref,
                            out_ref, x_sc, *acc_opt,
                            block_h, hd, n_groups):
    bt, n, c = q_ref.shape
    bh_d = block_h * hd
    cd = q_ref.dtype                 # MXU compute dtype (bf16)
    f32 = jnp.float32

    # Lane-dense q projection for the whole head group (scale already folded
    # into Wq / bq in the wrapper; the group slice is selected by BlockSpec).
    q_in = q_ref[...].reshape(bt * n, c)
    q_all = jnp.dot(q_in, wq_ref[0], preferred_element_type=f32) + bq_ref[0]
    q_all = q_all.astype(cd).reshape(bt, n, bh_d)

    # Serial per-head score / softmax / PV: only one (bt, n, n) tensor is live
    # at a time; each head's result lands in the bf16 slab at a static offset.
    for i in range(block_h):
        q_h = q_all[:, :, i * hd:(i + 1) * hd]                        # (bt, n, hd)
        s = jnp.einsum('bqd,bdk->bqk', q_h, kt_ref[...],
                       preferred_element_type=f32)                    # (bt, n, n)
        s = s - jnp.max(s, axis=-1, keepdims=True)
        p = jnp.exp(s)
        denom = jnp.sum(p, axis=-1, keepdims=True)                    # (bt, n, 1)
        x = jnp.einsum('bqk,bkd->bqd', p.astype(cd), v_ref[...],
                       preferred_element_type=f32)                    # (bt, n, hd)
        # Normalize AFTER the PV matmul (N*hd VPU multiplies instead of N^2).
        x = x * pl.reciprocal(denom, approx=True)
        x_sc[:, :, i * hd:(i + 1) * hd] = x.astype(cd)

    # Single lane-dense output projection for the whole head group
    # (contraction depth block_h*hd instead of hd).
    x_flat = x_sc[...].reshape(bt * n, bh_d)
    contrib = jnp.dot(x_flat, wp_ref[0],
                      preferred_element_type=f32).reshape(bt, n, c)

    if n_groups == 1:
        # No accumulator needed: one head group covers all heads.
        out_ref[...] = (contrib + bp_ref[...]).astype(out_ref.dtype)
    else:
        acc_sc = acc_opt[0]
        g = pl.program_id(1)

        @pl.when(g == 0)
        def _():
            acc_sc[...] = contrib

        @pl.when(g > 0)
        def _():
            acc_sc[...] += contrib

        @pl.when(g == n_groups - 1)
        def _():
            out_ref[...] = (acc_sc[...] + bp_ref[...]).astype(out_ref.dtype)


def share_self_attention(query, key, value, params, num_heads, *,
                         block_b=None, block_h=None,
                         compute_dtype=jnp.bfloat16):
    """query/key/value: (N, B, C) seq-first. Returns ((N, B, C), None)."""
    N, B, C = query.shape
    H = num_heads
    assert C % H == 0, "dim must be divisible by num_heads"
    hd = C // H
    scale = hd ** (-0.5)
    f32 = jnp.float32
    cd = compute_dtype

    wq, bq, wk, bk, wv, bv, wp, bp = params

    # Head-group size: smallest divisor of H whose lane width block_h*hd is
    # >= 128 (lane-dense q / out projections), capped at H.  Keeping the group
    # bounded also bounds the in-kernel head unroll and its N^2 intermediates.
    if block_h is None:
        target = min(H, -(-128 // hd))
        block_h = next(d for d in range(1, H + 1) if H % d == 0 and d >= target)
    assert H % block_h == 0, "block_h must divide num_heads"
    n_groups = H // block_h

    # VMEM-budget-driven batch block (v7x: 64 MiB/TC, v5e/v6e: 128 MiB).
    vmem_cap = _vmem_capacity_bytes()
    vmem_budget = int(vmem_cap * 0.75)
    out_itemsize = jnp.dtype(query.dtype).itemsize

    def _vmem_estimate(bb):
        in_bufs = 2 * bb * N * (C + 2 * hd) * 2            # q, k^T, v bf16, double-buffered
        out_bufs = 2 * bb * N * C * out_itemsize
        scratch = bb * N * block_h * hd * 2 + (bb * N * C * 4 if n_groups > 1 else 0)
        interm = bb * N * N * (4 + 4 + 2) + bb * N * C * (4 + 2)   # s, p, p_bf16, q_all
        weights = 2 * (2 * C * block_h * hd * 2 + C * 4)
        return in_bufs + out_bufs + scratch + interm + weights

    if block_b is None:
        # Keep >=2 grid steps on the parallel batch axis when possible so both
        # TensorCores (v7x megacore) get work; shrink to fit the VMEM budget.
        cap = B // 2 if (B > 1 and B % 2 == 0) else B
        block_b = 1
        for bb in range(cap, 0, -1):
            if B % bb == 0 and _vmem_estimate(bb) <= vmem_budget:
                block_b = bb
                break
    assert B % block_b == 0, "block_b must divide the batch"

    # --- wrapper-side prep (XLA): transposes fuse with the dtype casts. ---
    q_b = jnp.transpose(query, (1, 0, 2)).astype(cd)         # (B, N, C)
    key_b = jnp.transpose(key, (1, 0, 2))                    # (B, N, C), f32
    # PyTorch applies self.v to the *un-permuted* value and raw-reshapes; the
    # last-dim linear commutes with the reshape, so raw-reshape first.
    value_b = jnp.reshape(value, (B, N, C))                  # (B, N, C), f32

    # k / v are single-head and shared across all heads: project them once in
    # the wrapper (lane-dense GEMM) and feed only the hd-wide results.
    k_t = jnp.transpose(key_b @ wk.T + bk, (0, 2, 1)).astype(cd)   # (B, hd, N)
    v_p = (value_b @ wv.T + bv).astype(cd)                         # (B, N, hd)

    # Fold the attention scale into Wq / bq, pre-transpose to (in, out), and
    # split per head group so the kernel never transposes / slices weights.
    wq_g = (wq * scale).T.reshape(C, n_groups, block_h * hd)
    wq_g = jnp.transpose(wq_g, (1, 0, 2)).astype(cd)               # (G, C, bh*hd)
    bq_g = (bq * scale).reshape(n_groups, 1, block_h * hd).astype(f32)
    wp_g = wp.T.reshape(n_groups, block_h * hd, C).astype(cd)      # (G, bh*hd, C)
    bp_r = bp.reshape(1, C).astype(f32)

    grid = (B // block_b, n_groups)

    kernel = functools.partial(_share_self_attn_kernel,
                               block_h=block_h, hd=hd, n_groups=n_groups)

    scratch_shapes = [pltpu.VMEM((block_b, N, block_h * hd), cd)]   # per-group PV slab
    if n_groups > 1:
        scratch_shapes.append(pltpu.VMEM((block_b, N, C), jnp.float32))  # f32 out acc

    # Leave headroom for compiler scratch: ~85% of physical, capped at 112 MiB.
    vmem_limit = max(32 * 1024 * 1024,
                     min(int(vmem_cap * 0.85), 112 * 1024 * 1024))

    out = pl.pallas_call(
        kernel,
        out_shape=jax.ShapeDtypeStruct((B, N, C), query.dtype),
        grid_spec=pltpu.PrefetchScalarGridSpec(
            num_scalar_prefetch=0,
            grid=grid,
            in_specs=[
                pl.BlockSpec((block_b, N, C), lambda b, g: (b, 0, 0)),        # q
                pl.BlockSpec((block_b, hd, N), lambda b, g: (b, 0, 0)),       # k^T (pre-proj)
                pl.BlockSpec((block_b, N, hd), lambda b, g: (b, 0, 0)),       # v   (pre-proj)
                pl.BlockSpec((1, C, block_h * hd), lambda b, g: (g, 0, 0)),   # Wq, group g
                pl.BlockSpec((1, 1, block_h * hd), lambda b, g: (g, 0, 0)),   # bq, group g
                pl.BlockSpec((1, block_h * hd, C), lambda b, g: (g, 0, 0)),   # Wproj, group g
                pl.BlockSpec((1, C), lambda b, g: (0, 0)),                    # bproj
            ],
            out_specs=pl.BlockSpec((block_b, N, C), lambda b, g: (b, 0, 0)),
            scratch_shapes=scratch_shapes,
        ),
        compiler_params=pltpu.CompilerParams(
            # Head-group axis must stay innermost & "arbitrary" (revisited
            # output block + accumulator carry); batch axis is "parallel".
            dimension_semantics=("parallel", "arbitrary"),
            vmem_limit_bytes=vmem_limit,
        ),
    )(q_b, k_t, v_p, wq_g, bq_g, wp_g, bp_r)

    return jnp.transpose(out, (1, 0, 2)), None


def reference_share_self_attention(query, key, value, params, num_heads):
    """Pure-JAX f32 transliteration of the PyTorch forward (for validation)."""
    wq, bq, wk, bk, wv, bv, wp, bp = params
    key_p = jnp.transpose(key, (1, 0, 2))
    query_p = jnp.transpose(query, (1, 0, 2))
    B_, N, C = key_p.shape
    hd = C // num_heads
    k = (key_p @ wk.T + bk).reshape(B_, N, 1, hd)
    k = jnp.transpose(k, (0, 2, 1, 3))
    v = (value @ wv.T + bv).reshape(B_, N, 1, hd)      # raw reshape, like PyTorch
    v = jnp.transpose(v, (0, 2, 1, 3))
    B_, N, C = query_p.shape
    q = (query_p @ wq.T + bq).reshape(B_, N, num_heads, hd)
    q = jnp.transpose(q, (0, 2, 1, 3)) * (hd ** (-0.5))
    attn = q @ jnp.swapaxes(k, -2, -1)
    attn = jax.nn.softmax(attn, axis=-1)
    x = attn @ v
    x = jnp.swapaxes(x, 1, 2).reshape(B_, N, C)
    x = x @ wp.T + bp
    return jnp.transpose(x, (1, 0, 2))


def init_params(key, dim, num_heads):
    hd = dim // num_heads
    ks = jax.random.split(key, 8)
    std = 0.1
    wq = jax.random.normal(ks[0], (dim, dim), jnp.float32) * std
    bq = jax.random.normal(ks[1], (dim,), jnp.float32) * std
    wk = jax.random.normal(ks[2], (hd, dim), jnp.float32) * std
    bk = jax.random.normal(ks[3], (hd,), jnp.float32) * std
    wv = jax.random.normal(ks[4], (hd, dim), jnp.float32) * std
    bv = jax.random.normal(ks[5], (hd,), jnp.float32) * std
    wp = jax.random.normal(ks[6], (dim, dim), jnp.float32) * std
    bp = jax.random.normal(ks[7], (dim,), jnp.float32) * std
    return (wq, bq, wk, bk, wv, bv, wp, bp)


if __name__ == "__main__":
    N, B, C = 8, 2, 32          # seq, batch, hidden
    num_heads = 4

    root = jax.random.PRNGKey(0)
    kq, kk, kv, kp = jax.random.split(root, 4)
    query = jax.random.normal(kq, (N, B, C), jnp.float32)
    key_ = jax.random.normal(kk, (N, B, C), jnp.float32)
    value = jax.random.normal(kv, (N, B, C), jnp.float32)
    params = init_params(kp, C, num_heads)

    out, _ = share_self_attention(query, key_, value, params, num_heads)
    out = jax.block_until_ready(out)

    ref = jax.block_until_ready(
        reference_share_self_attention(query, key_, value, params, num_heads))

    # bf16 MXU operands + approximate reciprocal (per perf review) vs. a pure
    # f32 reference -> allow ~2e-2 combined tolerance.
    np.testing.assert_allclose(np.asarray(out), np.asarray(ref), rtol=2e-2, atol=2e-2)
    print("KERNEL_OK")
</pallas_src>

<mosaic_0001>
module attributes {stable_mosaic.version = 11 : i64} {
  func.func @_share_self_attn_kernel(%arg0: i32, %arg1: i32, %arg2: memref<1x8x32xbf16, #tpu.memory_space<vmem>>, %arg3: memref<1x8x8xbf16, #tpu.memory_space<vmem>>, %arg4: memref<1x8x8xbf16, #tpu.memory_space<vmem>>, %arg5: memref<1x32x32xbf16, #tpu.memory_space<vmem>>, %arg6: memref<1x1x32xf32, #tpu.memory_space<vmem>>, %arg7: memref<1x32x32xbf16, #tpu.memory_space<vmem>>, %arg8: memref<1x32xf32, #tpu.memory_space<vmem>>, %arg9: memref<1x8x32xf32, #tpu.memory_space<vmem>>, %arg10: memref<1x8x32xbf16, #tpu.memory_space<vmem>>) attributes {dimension_semantics = [#tpu.dimension_semantics<parallel>, #tpu.dimension_semantics<arbitrary>], iteration_bounds = array<i64: 2, 1>, scalar_prefetch = 0 : i64, scratch_operands = 1 : i64, tpu.core_type = #tpu.core_type<tc>, window_params = [{transform_indices = @transform_0, window_bounds = array<i64: 1, 8, 32>}, {transform_indices = @transform_1, window_bounds = array<i64: 1, 8, 8>}, {transform_indices = @transform_2, window_bounds = array<i64: 1, 8, 8>}, {transform_indices = @transform_3, window_bounds = array<i64: 1, 32, 32>}, {transform_indices = @transform_4, window_bounds = array<i64: 1, 1, 32>}, {transform_indices = @transform_5, window_bounds = array<i64: 1, 32, 32>}, {pipeline_mode = #tpu.pipeline_mode<synchronous>, transform_indices = @transform_6, window_bounds = array<i64: 1, 32>}, {transform_indices = @transform_7, window_bounds = array<i64: 1, 8, 32>}]} {
    %c0 = arith.constant 0 : index
    %c0_0 = arith.constant 0 : index
    %c0_1 = arith.constant 0 : index
    %0 = vector.load %arg2[%c0, %c0_0, %c0_1] : memref<1x8x32xbf16, #tpu.memory_space<vmem>>, vector<1x8x32xbf16>
    %1 = vector.shape_cast %0 : vector<1x8x32xbf16> to vector<8x32xbf16>
    %c0_2 = arith.constant 0 : index
    %c0_3 = arith.constant 0 : index
    %c0_4 = arith.constant 0 : index
    %2 = vector.load %arg5[%c0_2, %c0_3, %c0_4] : memref<1x32x32xbf16, #tpu.memory_space<vmem>>, vector<1x32x32xbf16>
    %3 = vector.shape_cast %2 : vector<1x32x32xbf16> to vector<32x32xbf16>
    %cst = arith.constant dense<0.000000e+00> : vector<8x32xf32>
    %4 = tpu.matmul %1, %3, %cst {dimension_numbers = #tpu.dot_dimension_numbers<[1], [0], [0], [1], [0, 0, 1, 1], [], []>} : vector<8x32xbf16>, vector<32x32xbf16>, vector<8x32xf32> -> vector<8x32xf32>
    %c0_5 = arith.constant 0 : index
    %c0_6 = arith.constant 0 : index
    %c0_7 = arith.constant 0 : index
    %5 = vector.load %arg6[%c0_5, %c0_6, %c0_7] : memref<1x1x32xf32, #tpu.memory_space<vmem>>, vector<1x1x32xf32>
    %6 = vector.shape_cast %5 : vector<1x1x32xf32> to vector<1x32xf32>
    %7 = vector.broadcast %6 : vector<1x32xf32> to vector<8x32xf32>
    %8 = arith.addf %4, %7 : vector<8x32xf32>
    %9 = arith.truncf %8 : vector<8x32xf32> to vector<8x32xbf16>
    %10 = vector.shape_cast %9 : vector<8x32xbf16> to vector<1x8x32xbf16>
    %11 = vector.extract_strided_slice %10 {offsets = [0, 0, 0], sizes = [1, 8, 8], strides = [1, 1, 1]} : vector<1x8x32xbf16> to vector<1x8x8xbf16>
    %c0_8 = arith.constant 0 : index
    %c0_9 = arith.constant 0 : index
    %c0_10 = arith.constant 0 : index
    %12 = vector.load %arg3[%c0_8, %c0_9, %c0_10] : memref<1x8x8xbf16, #tpu.memory_space<vmem>>, vector<1x8x8xbf16>
    "tpu.trace_start"() <{level = 10 : i32, message = "bqd,bdk->bqk"}> : () -> ()
    %cst_11 = arith.constant dense<0.000000e+00> : vector<1x8x8xf32>
    %13 = tpu.matmul %11, %12, %cst_11 {dimension_numbers = #tpu.dot_dimension_numbers<[2], [1], [1], [2], [0, 0, 0, 1, 1, 2], [0], [0]>} : vector<1x8x8xbf16>, vector<1x8x8xbf16>, vector<1x8x8xf32> -> vector<1x8x8xf32>
    "tpu.trace_stop"() : () -> ()
    %cst_12 = arith.constant dense<0xFF800000> : vector<1x8xf32>
    %14 = vector.multi_reduction <maximumf>, %13, %cst_12 [2] : vector<1x8x8xf32> to vector<1x8xf32>
    %15 = vector.shape_cast %14 : vector<1x8xf32> to vector<1x8x1xf32>
    %16 = vector.broadcast %15 : vector<1x8x1xf32> to vector<1x8x8xf32>
    %17 = arith.subf %13, %16 : vector<1x8x8xf32>
    %18 = math.exp %17 : vector<1x8x8xf32>
    %cst_13 = arith.constant dense<0.000000e+00> : vector<1x8xf32>
    %19 = vector.multi_reduction <add>, %18, %cst_13 [2] : vector<1x8x8xf32> to vector<1x8xf32>
    %20 = vector.shape_cast %19 : vector<1x8xf32> to vector<1x8x1xf32>
    %21 = arith.truncf %18 : vector<1x8x8xf32> to vector<1x8x8xbf16>
    %c0_14 = arith.constant 0 : index
    %c0_15 = arith.constant 0 : index
    %c0_16 = arith.constant 0 : index
    %22 = vector.load %arg4[%c0_14, %c0_15, %c0_16] : memref<1x8x8xbf16, #tpu.memory_space<vmem>>, vector<1x8x8xbf16>
    "tpu.trace_start"() <{level = 10 : i32, message = "bqk,bkd->bqd"}> : () -> ()
    %cst_17 = arith.constant dense<0.000000e+00> : vector<1x8x8xf32>
    %23 = tpu.matmul %21, %22, %cst_17 {dimension_numbers = #tpu.dot_dimension_numbers<[2], [1], [1], [2], [0, 0, 0, 1, 1, 2], [0], [0]>} : vector<1x8x8xbf16>, vector<1x8x8xbf16>, vector<1x8x8xf32> -> vector<1x8x8xf32>
    "tpu.trace_stop"() : () -> ()
    %24 = tpu.reciprocal %20 {approx = true} : vector<1x8x1xf32> -> vector<1x8x1xf32>
    %25 = vector.broadcast %24 : vector<1x8x1xf32> to vector<1x8x8xf32>
    %26 = arith.mulf %23, %25 : vector<1x8x8xf32>
    %27 = arith.truncf %26 : vector<1x8x8xf32> to vector<1x8x8xbf16>
    %c0_18 = arith.constant 0 : index
    %c0_19 = arith.constant 0 : index
    %c0_20 = arith.constant 0 : index
    %28 = vector.load %arg10[%c0_18, %c0_19, %c0_20] : memref<1x8x32xbf16, #tpu.memory_space<vmem>>, vector<1x8x8xbf16>
    tpu.vector_store %arg10[%c0_18, %c0_19, %c0_20], %27 {strides = array<i32>} : memref<1x8x32xbf16, #tpu.memory_space<vmem>>, vector<1x8x8xbf16>,
    %29 = vector.extract_strided_slice %10 {offsets = [0, 0, 8], sizes = [1, 8, 8], strides = [1, 1, 1]} : vector<1x8x32xbf16> to vector<1x8x8xbf16>
    %c0_21 = arith.constant 0 : index
    %c0_22 = arith.constant 0 : index
    %c0_23 = arith.constant 0 : index
    %30 = vector.load %arg3[%c0_21, %c0_22, %c0_23] : memref<1x8x8xbf16, #tpu.memory_space<vmem>>, vector<1x8x8xbf16>
    "tpu.trace_start"() <{level = 10 : i32, message = "bqd,bdk->bqk"}> : () -> ()
    %cst_24 = arith.constant dense<0.000000e+00> : vector<1x8x8xf32>
    %31 = tpu.matmul %29, %30, %cst_24 {dimension_numbers = #tpu.dot_dimension_numbers<[2], [1], [1], [2], [0, 0, 0, 1, 1, 2], [0], [0]>} : vector<1x8x8xbf16>, vector<1x8x8xbf16>, vector<1x8x8xf32> -> vector<1x8x8xf32>
    "tpu.trace_stop"() : () -> ()
    %cst_25 = arith.constant dense<0xFF800000> : vector<1x8xf32>
    %32 = vector.multi_reduction <maximumf>, %31, %cst_25 [2] : vector<1x8x8xf32> to vector<1x8xf32>
    %33 = vector.shape_cast %32 : vector<1x8xf32> to vector<1x8x1xf32>
    %34 = vector.broadcast %33 : vector<1x8x1xf32> to vector<1x8x8xf32>
    %35 = arith.subf %31, %34 : vector<1x8x8xf32>
    %36 = math.exp %35 : vector<1x8x8xf32>
    %cst_26 = arith.constant dense<0.000000e+00> : vector<1x8xf32>
    %37 = vector.multi_reduction <add>, %36, %cst_26 [2] : vector<1x8x8xf32> to vector<1x8xf32>
    %38 = vector.shape_cast %37 : vector<1x8xf32> to vector<1x8x1xf32>
    %39 = arith.truncf %36 : vector<1x8x8xf32> to vector<1x8x8xbf16>
    %c0_27 = arith.constant 0 : index
    %c0_28 = arith.constant 0 : index
    %c0_29 = arith.constant 0 : index
    %40 = vector.load %arg4[%c0_27, %c0_28, %c0_29] : memref<1x8x8xbf16, #tpu.memory_space<vmem>>, vector<1x8x8xbf16>
    "tpu.trace_start"() <{level = 10 : i32, message = "bqk,bkd->bqd"}> : () -> ()
    %cst_30 = arith.constant dense<0.000000e+00> : vector<1x8x8xf32>
    %41 = tpu.matmul %39, %40, %cst_30 {dimension_numbers = #tpu.dot_dimension_numbers<[2], [1], [1], [2], [0, 0, 0, 1, 1, 2], [0], [0]>} : vector<1x8x8xbf16>, vector<1x8x8xbf16>, vector<1x8x8xf32> -> vector<1x8x8xf32>
    "tpu.trace_stop"() : () -> ()
    %42 = tpu.reciprocal %38 {approx = true} : vector<1x8x1xf32> -> vector<1x8x1xf32>
    %43 = vector.broadcast %42 : vector<1x8x1xf32> to vector<1x8x8xf32>
    %44 = arith.mulf %41, %43 : vector<1x8x8xf32>
    %45 = arith.truncf %44 : vector<1x8x8xf32> to vector<1x8x8xbf16>
    %c0_31 = arith.constant 0 : index
    %c0_32 = arith.constant 0 : index
    %c8 = arith.constant 8 : index
    %46 = vector.load %arg10[%c0_31, %c0_32, %c8] : memref<1x8x32xbf16, #tpu.memory_space<vmem>>, vector<1x8x8xbf16>
    tpu.vector_store %arg10[%c0_31, %c0_32, %c8], %45 {strides = array<i32>} : memref<1x8x32xbf16, #tpu.memory_space<vmem>>, vector<1x8x8xbf16>,
    %47 = vector.extract_strided_slice %10 {offsets = [0, 0, 16], sizes = [1, 8, 8], strides = [1, 1, 1]} : vector<1x8x32xbf16> to vector<1x8x8xbf16>
    %c0_33 = arith.constant 0 : index
    %c0_34 = arith.constant 0 : index
    %c0_35 = arith.constant 0 : index
    %48 = vector.load %arg3[%c0_33, %c0_34, %c0_35] : memref<1x8x8xbf16, #tpu.memory_space<vmem>>, vector<1x8x8xbf16>
    "tpu.trace_start"() <{level = 10 : i32, message = "bqd,bdk->bqk"}> : () -> ()
    %cst_36 = arith.constant dense<0.000000e+00> : vector<1x8x8xf32>
    %49 = tpu.matmul %47, %48, %cst_36 {dimension_numbers = #tpu.dot_dimension_numbers<[2], [1], [1], [2], [0, 0, 0, 1, 1, 2], [0], [0]>} : vector<1x8x8xbf16>, vector<1x8x8xbf16>, vector<1x8x8xf32> -> vector<1x8x8xf32>
    "tpu.trace_stop"() : () -> ()
    %cst_37 = arith.constant dense<0xFF800000> : vector<1x8xf32>
    %50 = vector.multi_reduction <maximumf>, %49, %cst_37 [2] : vector<1x8x8xf32> to vector<1x8xf32>
    %51 = vector.shape_cast %50 : vector<1x8xf32> to vector<1x8x1xf32>
    %52 = vector.broadcast %51 : vector<1x8x1xf32> to vector<1x8x8xf32>
    %53 = arith.subf %49, %52 : vector<1x8x8xf32>
    %54 = math.exp %53 : vector<1x8x8xf32>
    %cst_38 = arith.constant dense<0.000000e+00> : vector<1x8xf32>
    %55 = vector.multi_reduction <add>, %54, %cst_38 [2] : vector<1x8x8xf32> to vector<1x8xf32>
    %56 = vector.shape_cast %55 : vector<1x8xf32> to vector<1x8x1xf32>
    %57 = arith.truncf %54 : vector<1x8x8xf32> to vector<1x8x8xbf16>
    %c0_39 = arith.constant 0 : index
    %c0_40 = arith.constant 0 : index
    %c0_41 = arith.constant 0 : index
    %58 = vector.load %arg4[%c0_39, %c0_40, %c0_41] : memref<1x8x8xbf16, #tpu.memory_space<vmem>>, vector<1x8x8xbf16>
    "tpu.trace_start"() <{level = 10 : i32, message = "bqk,bkd->bqd"}> : () -> ()
    %cst_42 = arith.constant dense<0.000000e+00> : vector<1x8x8xf32>
    %59 = tpu.matmul %57, %58, %cst_42 {dimension_numbers = #tpu.dot_dimension_numbers<[2], [1], [1], [2], [0, 0, 0, 1, 1, 2], [0], [0]>} : vector<1x8x8xbf16>, vector<1x8x8xbf16>, vector<1x8x8xf32> -> vector<1x8x8xf32>
    "tpu.trace_stop"() : () -> ()
    %60 = tpu.reciprocal %56 {approx = true} : vector<1x8x1xf32> -> vector<1x8x1xf32>
    %61 = vector.broadcast %60 : vector<1x8x1xf32> to vector<1x8x8xf32>
    %62 = arith.mulf %59, %61 : vector<1x8x8xf32>
    %63 = arith.truncf %62 : vector<1x8x8xf32> to vector<1x8x8xbf16>
    %c0_43 = arith.constant 0 : index
    %c0_44 = arith.constant 0 : index
    %c16 = arith.constant 16 : index
    %64 = vector.load %arg10[%c0_43, %c0_44, %c16] : memref<1x8x32xbf16, #tpu.memory_space<vmem>>, vector<1x8x8xbf16>
    tpu.vector_store %arg10[%c0_43, %c0_44, %c16], %63 {strides = array<i32>} : memref<1x8x32xbf16, #tpu.memory_space<vmem>>, vector<1x8x8xbf16>,
    %65 = vector.extract_strided_slice %10 {offsets = [0, 0, 24], sizes = [1, 8, 8], strides = [1, 1, 1]} : vector<1x8x32xbf16> to vector<1x8x8xbf16>
    %c0_45 = arith.constant 0 : index
    %c0_46 = arith.constant 0 : index
    %c0_47 = arith.constant 0 : index
    %66 = vector.load %arg3[%c0_45, %c0_46, %c0_47] : memref<1x8x8xbf16, #tpu.memory_space<vmem>>, vector<1x8x8xbf16>
    "tpu.trace_start"() <{level = 10 : i32, message = "bqd,bdk->bqk"}> : () -> ()
    %cst_48 = arith.constant dense<0.000000e+00> : vector<1x8x8xf32>
    %67 = tpu.matmul %65, %66, %cst_48 {dimension_numbers = #tpu.dot_dimension_numbers<[2], [1], [1], [2], [0, 0, 0, 1, 1, 2], [0], [0]>} : vector<1x8x8xbf16>, vector<1x8x8xbf16>, vector<1x8x8xf32> -> vector<1x8x8xf32>
    "tpu.trace_stop"() : () -> ()
    %cst_49 = arith.constant dense<0xFF800000> : vector<1x8xf32>
    %68 = vector.multi_reduction <maximumf>, %67, %cst_49 [2] : vector<1x8x8xf32> to vector<1x8xf32>
    %69 = vector.shape_cast %68 : vector<1x8xf32> to vector<1x8x1xf32>
    %70 = vector.broadcast %69 : vector<1x8x1xf32> to vector<1x8x8xf32>
    %71 = arith.subf %67, %70 : vector<1x8x8xf32>
    %72 = math.exp %71 : vector<1x8x8xf32>
    %cst_50 = arith.constant dense<0.000000e+00> : vector<1x8xf32>
    %73 = vector.multi_reduction <add>, %72, %cst_50 [2] : vector<1x8x8xf32> to vector<1x8xf32>
    %74 = vector.shape_cast %73 : vector<1x8xf32> to vector<1x8x1xf32>
    %75 = arith.truncf %72 : vector<1x8x8xf32> to vector<1x8x8xbf16>
    %c0_51 = arith.constant 0 : index
    %c0_52 = arith.constant 0 : index
    %c0_53 = arith.constant 0 : index
    %76 = vector.load %arg4[%c0_51, %c0_52, %c0_53] : memref<1x8x8xbf16, #tpu.memory_space<vmem>>, vector<1x8x8xbf16>
    "tpu.trace_start"() <{level = 10 : i32, message = "bqk,bkd->bqd"}> : () -> ()
    %cst_54 = arith.constant dense<0.000000e+00> : vector<1x8x8xf32>
    %77 = tpu.matmul %75, %76, %cst_54 {dimension_numbers = #tpu.dot_dimension_numbers<[2], [1], [1], [2], [0, 0, 0, 1, 1, 2], [0], [0]>} : vector<1x8x8xbf16>, vector<1x8x8xbf16>, vector<1x8x8xf32> -> vector<1x8x8xf32>
    "tpu.trace_stop"() : () -> ()
    %78 = tpu.reciprocal %74 {approx = true} : vector<1x8x1xf32> -> vector<1x8x1xf32>
    %79 = vector.broadcast %78 : vector<1x8x1xf32> to vector<1x8x8xf32>
    %80 = arith.mulf %77, %79 : vector<1x8x8xf32>
    %81 = arith.truncf %80 : vector<1x8x8xf32> to vector<1x8x8xbf16>
    %c0_55 = arith.constant 0 : index
    %c0_56 = arith.constant 0 : index
    %c24 = arith.constant 24 : index
    %82 = vector.load %arg10[%c0_55, %c0_56, %c24] : memref<1x8x32xbf16, #tpu.memory_space<vmem>>, vector<1x8x8xbf16>
    tpu.vector_store %arg10[%c0_55, %c0_56, %c24], %81 {strides = array<i32>} : memref<1x8x32xbf16, #tpu.memory_space<vmem>>, vector<1x8x8xbf16>,
    %c0_57 = arith.constant 0 : index
    %c0_58 = arith.constant 0 : index
    %c0_59 = arith.constant 0 : index
    %83 = vector.load %arg10[%c0_57, %c0_58, %c0_59] : memref<1x8x32xbf16, #tpu.memory_space<vmem>>, vector<1x8x32xbf16>
    %84 = vector.shape_cast %83 : vector<1x8x32xbf16> to vector<8x32xbf16>
    %c0_60 = arith.constant 0 : index
    %c0_61 = arith.constant 0 : index
    %c0_62 = arith.constant 0 : index
    %85 = vector.load %arg7[%c0_60, %c0_61, %c0_62] : memref<1x32x32xbf16, #tpu.memory_space<vmem>>, vector<1x32x32xbf16>
    %86 = vector.shape_cast %85 : vector<1x32x32xbf16> to vector<32x32xbf16>
    %cst_63 = arith.constant dense<0.000000e+00> : vector<8x32xf32>
    %87 = tpu.matmul %84, %86, %cst_63 {dimension_numbers = #tpu.dot_dimension_numbers<[1], [0], [0], [1], [0, 0, 1, 1], [], []>} : vector<8x32xbf16>, vector<32x32xbf16>, vector<8x32xf32> -> vector<8x32xf32>
    %88 = vector.shape_cast %87 : vector<8x32xf32> to vector<1x8x32xf32>
    %c0_64 = arith.constant 0 : index
    %c0_65 = arith.constant 0 : index
    %89 = vector.load %arg8[%c0_64, %c0_65] : memref<1x32xf32, #tpu.memory_space<vmem>>, vector<1x32xf32>
    %90 = vector.shape_cast %89 : vector<1x32xf32> to vector<1x1x32xf32>
    %91 = vector.broadcast %90 : vector<1x1x32xf32> to vector<1x8x32xf32>
    %92 = arith.addf %88, %91 : vector<1x8x32xf32>
    %c0_66 = arith.constant 0 : index
    %c0_67 = arith.constant 0 : index
    %c0_68 = arith.constant 0 : index
    %93 = vector.load %arg9[%c0_66, %c0_67, %c0_68] : memref<1x8x32xf32, #tpu.memory_space<vmem>>, vector<1x8x32xf32>
    tpu.vector_store %arg9[%c0_66, %c0_67, %c0_68], %92 {strides = array<i32>} : memref<1x8x32xf32, #tpu.memory_space<vmem>>, vector<1x8x32xf32>,
    return
  }
  func.func @transform_0(%arg0: i32, %arg1: i32) -> (i32, i32, i32) {
    %c0_i32 = arith.constant 0 : i32
    %c0_i32_0 = arith.constant 0 : i32
    %c0_i32_1 = arith.constant 0 : i32
    return %arg0, %c0_i32, %c0_i32_0 : i32, i32, i32
  }
  func.func @transform_1(%arg0: i32, %arg1: i32) -> (i32, i32, i32) {
    %c0_i32 = arith.constant 0 : i32
    %c0_i32_0 = arith.constant 0 : i32
    %c0_i32_1 = arith.constant 0 : i32
    return %arg0, %c0_i32, %c0_i32_0 : i32, i32, i32
  }
  func.func @transform_2(%arg0: i32, %arg1: i32) -> (i32, i32, i32) {
    %c0_i32 = arith.constant 0 : i32
    %c0_i32_0 = arith.constant 0 : i32
    %c0_i32_1 = arith.constant 0 : i32
    return %arg0, %c0_i32, %c0_i32_0 : i32, i32, i32
  }
  func.func @transform_3(%arg0: i32, %arg1: i32) -> (i32, i32, i32) {
    %c0_i32 = arith.constant 0 : i32
    %c0_i32_0 = arith.constant 0 : i32
    %c0_i32_1 = arith.constant 0 : i32
    return %arg1, %c0_i32, %c0_i32_0 : i32, i32, i32
  }
  func.func @transform_4(%arg0: i32, %arg1: i32) -> (i32, i32, i32) {
    %c0_i32 = arith.constant 0 : i32
    %c0_i32_0 = arith.constant 0 : i32
    %c0_i32_1 = arith.constant 0 : i32
    return %arg1, %c0_i32, %c0_i32_0 : i32, i32, i32
  }
  func.func @transform_5(%arg0: i32, %arg1: i32) -> (i32, i32, i32) {
    %c0_i32 = arith.constant 0 : i32
    %c0_i32_0 = arith.constant 0 : i32
    %c0_i32_1 = arith.constant 0 : i32
    return %arg1, %c0_i32, %c0_i32_0 : i32, i32, i32
  }
  func.func @transform_6(%arg0: i32, %arg1: i32) -> (i32, i32) {
    %c0_i32 = arith.constant 0 : i32
    %c0_i32_0 = arith.constant 0 : i32
    %c0_i32_1 = arith.constant 0 : i32
    return %c0_i32, %c0_i32_0 : i32, i32
  }
  func.func @transform_7(%arg0: i32, %arg1: i32) -> (i32, i32, i32) {
    %c0_i32 = arith.constant 0 : i32
    %c0_i32_0 = arith.constant 0 : i32
    %c0_i32_1 = arith.constant 0 : i32
    return %arg0, %c0_i32, %c0_i32_0 : i32, i32, i32
  }
}

</mosaic_0001>

<llo_original>
// kernel: tpu_custom_call.1
$region0: #{tpu_custom_call.1}
  #allocation0 [shape = 'u32[]', space=smem, size = 0x4, offset = 0x4, fixed_abs, tag = 'smem constant byte address 0x4 - core index']
  #allocation1 [shape = 'u32[72,128]{1,0:T(1,128)}', space=vmem, size = 0x9000, scoped, tag = 'internal scratch']
  #allocation2 [shape = 'bf16[1,8,32]{2,1,0:T(8,128)(2,1)}', space=vmem, size = 0x800, scoped, tag = 'scratch operand']
  %s0 = inlined_call_operand.hbm [shape: bf16[2,8,32], index: 0, kind: input, shape index: {}]
  %s1 = inlined_call_operand.hbm [shape: bf16[2,8,8], index: 1, kind: input, shape index: {}]
  %s2 = inlined_call_operand.hbm [shape: bf16[2,8,8], index: 2, kind: input, shape index: {}]
  %s3 = inlined_call_operand.hbm [shape: bf16[1,32,32], index: 3, kind: input, shape index: {}]
  %s4 = inlined_call_operand.vmem [shape: f32[1,1,32], index: 4, kind: input, shape index: {}]
  %s5 = inlined_call_operand.hbm [shape: bf16[1,32,32], index: 5, kind: input, shape index: {}]
  %s6 = inlined_call_operand.vmem [shape: f32[1,32], index: 6, kind: input, shape index: {}]
  %s7 = inlined_call_operand.hbm [shape: f32[2,8,32], index: 7, kind: output, shape index: {}]
  %s8 = sld [smem:[#allocation0]]
  $region81: #{tpu_custom_call.1} parent=0
    _
  %s10 = ssub.s32 1, %s8
  %s11 = scalar_select 0, %s10, %s8
  $region1: #{tpu_custom_call.1} parent=0
    #allocation3 [shape = 'u8[4096]{0}', space=vmem, size = 0x1000, scoped, tag = 'input window, operand 0']
    #allocation4 [shape = 's32[2]{0}', space=sflag, size = 0x8, scoped, tag = 'scoped memory for tpu_custom_call.1']
    #allocation5 [shape = 's32[2]{0}', space=sflag, size = 0x8, scoped, tag = 'scoped memory for tpu_custom_call.1']
    #allocation6 [shape = 'u8[4096]{0}', space=vmem, size = 0x1000, scoped, tag = 'input window, operand 1']
    #allocation7 [shape = 's32[2]{0}', space=sflag, size = 0x8, scoped, tag = 'scoped memory for tpu_custom_call.1']
    #allocation8 [shape = 'u8[4096]{0}', space=vmem, size = 0x1000, scoped, tag = 'input window, operand 2']
    #allocation9 [shape = 'u8[8192]{0}', space=vmem, size = 0x2000, scoped, tag = 'input window, operand 3, single buffered']
    #allocation10 [shape = 's32[1]{0}', space=sflag, size = 0x4, scoped, tag = 'scoped memory for tpu_custom_call.1']
    #allocation11 [shape = 'u8[8192]{0}', space=vmem, size = 0x2000, scoped, tag = 'input window, operand 5, single buffered']
    #allocation12 [shape = 'u8[8192]{0}', space=vmem, size = 0x2000, scoped, tag = 'output window, operand 0']
    %12 = vsyncpa [#allocation4], 0
    %s13 = scalar_lea.sflag [#allocation4], 1
    %14 = vsyncpa %s13, 0
    %15 = vsyncpa [#allocation7], 0
    %s16 = scalar_lea.sflag [#allocation7], 1
    %17 = vsyncpa %s16, 0
    %18 = vsyncpa [#allocation10], 0
    %19 = vsyncpa [#allocation5], 0
    %s20 = scalar_lea.sflag [#allocation5], 1
    %21 = vsyncpa %s20, 0
    loop: start=0, step=1, limit=4
    $region2: #{tpu_custom_call.1} parent=1 // loop_pre_header
      _
    $region3: #{tpu_custom_call.1} parent=1 // loop_header
      %s23 = sphi 0, %s27
      %p24 = scmp.ge.s32.totalorder %s23, 4
      %s30 = sphi 0, %s42
      %s31 = sphi 0, %s38
      %s32 = sphi 0, %s30
      %s33 = sphi 0, %s31
      %s34 = sphi 0, %s32
      %s35 = sphi 0, %s33
      %s45 = sphi 0, %s47
      %s48 = sphi 0, %s45
      %s49 = sphi 0, %s48
      %s65 = sphi 0, %s49
      %s71 = sphi 0, %s73
      %s74 = sphi 0, %s71
      %s75 = sphi 0, %s74
      %s91 = sphi 0, %s75
      %s97 = sphi 0, %s99
      %s100 = sphi 0, %s97
      %s101 = sphi 0, %s100
      %s117 = sphi 0, %s101
      %s123 = sphi 0, %s125
      %s126 = sphi 0, %s123
      %s127 = sphi 0, %s126
      %s143 = sphi 0, %s127
      %s149 = sphi 0, %s151
      %s152 = sphi 0, %s149
      %s153 = sphi 0, %s152
      %s169 = sphi 0, %s153
      %s175 = sphi 0, %s177
      %s178 = sphi 0, %s175
      %s179 = sphi 0, %s178
      %s195 = sphi 0, %s179
      %s199 = sphi 0, %s199
      %s201 = sphi 0, %s199
      %s202 = sphi 0, %s201
      %s216 = sphi 0, %s202
      %s222 = sphi 0, %s224
      %s225 = sphi 0, %s222
      %s226 = sphi 0, %s225
      %s242 = sphi 0, %s226
    $region4: #{tpu_custom_call.1} parent=1 // loop_header_branch
      %26 = sbr.rel (%p24) target = $region8
    $region5: #{tpu_custom_call.1} parent=1 // loop_body
      %s28 = ssub.s32 %s23, 1
      %s29 = ssub.s32 %s23, 2
      %s36 = sadd.s32 1, %s31
      %p37 = scmp.ge.s32.totalorder %s36, 1
      %s38 = scalar_select %p37, 0, %s36
      %s39 = sadd.s32 1, %s30
      %s40 = scalar_select %p37, %s39, %s30
      %p41 = scmp.ge.s32.totalorder %s40, 2
      %s42 = scalar_select %p41, 0, %s40
      %s43 = ssub.s32 %s30, %s42
      %p44 = scmp.eq.s32.totalorder %s43, 0
      %s46 = sadd.s32 %s45, 1
      %s47 = scalar_select %p44, %s45, %s46
      %p50 = pneg %p44
      %p51 = scmp.eq.s32.totalorder %s23, 1
      %p52 = por %p50, %p51
      %p53 = scmp.ne.s32.totalorder %s45, %s48
      %p54 = scmp.eq.s32.totalorder %s23, 0
      %p55 = por %p53, %p54
      %p56 = scmp.ne.s32.totalorder %s45, %s48
      %p57 = scmp.eq.s32.totalorder %s28, 1
      %p58 = por %p56, %p57
      %p59 = scmp.ne.s32.totalorder %s48, %s49
      %p60 = scmp.eq.s32.totalorder %s28, 0
      %p61 = por %p59, %p60
      %p62 = scmp.ne.s32.totalorder %s48, %s49
      %p63 = scmp.eq.s32.totalorder %s29, 1
      %p64 = por %p62, %p63
      %p66 = scmp.ne.s32.totalorder %s49, %s65
      %p67 = scmp.eq.s32.totalorder %s29, 0
      %p68 = por %p66, %p67
      %s69 = ssub.s32 %s30, %s42
      %p70 = scmp.eq.s32.totalorder %s69, 0
      %s72 = sadd.s32 %s71, 1
      %s73 = scalar_select %p70, %s71, %s72
      %p76 = pneg %p70
      %p77 = scmp.eq.s32.totalorder %s23, 1
      %p78 = por %p76, %p77
      %p79 = scmp.ne.s32.totalorder %s71, %s74
      %p80 = scmp.eq.s32.totalorder %s23, 0
      %p81 = por %p79, %p80
      %p82 = scmp.ne.s32.totalorder %s71, %s74
      %p83 = scmp.eq.s32.totalorder %s28, 1
      %p84 = por %p82, %p83
      %p85 = scmp.ne.s32.totalorder %s74, %s75
      %p86 = scmp.eq.s32.totalorder %s28, 0
      %p87 = por %p85, %p86
      %p88 = scmp.ne.s32.totalorder %s74, %s75
      %p89 = scmp.eq.s32.totalorder %s29, 1
      %p90 = por %p88, %p89
      %p92 = scmp.ne.s32.totalorder %s75, %s91
      %p93 = scmp.eq.s32.totalorder %s29, 0
      %p94 = por %p92, %p93
      %s95 = ssub.s32 %s30, %s42
      %p96 = scmp.eq.s32.totalorder %s95, 0
      %s98 = sadd.s32 %s97, 1
      %s99 = scalar_select %p96, %s97, %s98
      %p102 = pneg %p96
      %p103 = scmp.eq.s32.totalorder %s23, 1
      %p104 = por %p102, %p103
      %p105 = scmp.ne.s32.totalorder %s97, %s100
      %p106 = scmp.eq.s32.totalorder %s23, 0
      %p107 = por %p105, %p106
      %p108 = scmp.ne.s32.totalorder %s97, %s100
      %p109 = scmp.eq.s32.totalorder %s28, 1
      %p110 = por %p108, %p109
      %p111 = scmp.ne.s32.totalorder %s100, %s101
      %p112 = scmp.eq.s32.totalorder %s28, 0
      %p113 = por %p111, %p112
      %p114 = scmp.ne.s32.totalorder %s100, %s101
      %p115 = scmp.eq.s32.totalorder %s29, 1
      %p116 = por %p114, %p115
      %p118 = scmp.ne.s32.totalorder %s101, %s117
      %p119 = scmp.eq.s32.totalorder %s29, 0
      %p120 = por %p118, %p119
      %s121 = ssub.s32 %s31, %s38
      %p122 = scmp.eq.s32.totalorder %s121, 0
      %s124 = sadd.s32 %s123, 1
      %s125 = scalar_select %p122, %s123, %s124
      %p128 = pneg %p122
      %p129 = scmp.eq.s32.totalorder %s23, 1
      %p130 = por %p128, %p129
      %p131 = scmp.ne.s32.totalorder %s123, %s126
      %p132 = scmp.eq.s32.totalorder %s23, 0
      %p133 = por %p131, %p132
      %p134 = scmp.ne.s32.totalorder %s123, %s126
      %p135 = scmp.eq.s32.totalorder %s28, 1
      %p136 = por %p134, %p135
      %p137 = scmp.ne.s32.totalorder %s126, %s127
      %p138 = scmp.eq.s32.totalorder %s28, 0
      %p139 = por %p137, %p138
      %p140 = scmp.ne.s32.totalorder %s126, %s127
      %p141 = scmp.eq.s32.totalorder %s29, 1
      %p142 = por %p140, %p141
      %p144 = scmp.ne.s32.totalorder %s127, %s143
      %p145 = scmp.eq.s32.totalorder %s29, 0
      %p146 = por %p144, %p145
      %s147 = ssub.s32 %s31, %s38
      %p148 = scmp.eq.s32.totalorder %s147, 0
      %s150 = sadd.s32 %s149, 1
      %s151 = scalar_select %p148, %s149, %s150
      %p154 = pneg %p148
      %p155 = scmp.eq.s32.totalorder %s23, 1
      %p156 = por %p154, %p155
      %p157 = scmp.ne.s32.totalorder %s149, %s152
      %p158 = scmp.eq.s32.totalorder %s23, 0
      %p159 = por %p157, %p158
      %p160 = scmp.ne.s32.totalorder %s149, %s152
      %p161 = scmp.eq.s32.totalorder %s28, 1
      %p162 = por %p160, %p161
      %p163 = scmp.ne.s32.totalorder %s152, %s153
      %p164 = scmp.eq.s32.totalorder %s28, 0
      %p165 = por %p163, %p164
      %p166 = scmp.ne.s32.totalorder %s152, %s153
      %p167 = scmp.eq.s32.totalorder %s29, 1
      %p168 = por %p166, %p167
      %p170 = scmp.ne.s32.totalorder %s153, %s169
      %p171 = scmp.eq.s32.totalorder %s29, 0
      %p172 = por %p170, %p171
      %s173 = ssub.s32 %s31, %s38
      %p174 = scmp.eq.s32.totalorder %s173, 0
      %s176 = sadd.s32 %s175, 1
      %s177 = scalar_select %p174, %s175, %s176
      %p180 = pneg %p174
      %p181 = scmp.eq.s32.totalorder %s23, 1
      %p182 = por %p180, %p181
      %p183 = scmp.ne.s32.totalorder %s175, %s178
      %p184 = scmp.eq.s32.totalorder %s23, 0
      %p185 = por %p183, %p184
      %p186 = scmp.ne.s32.totalorder %s175, %s178
      %p187 = scmp.eq.s32.totalorder %s28, 1
      %p188 = por %p186, %p187
      %p189 = scmp.ne.s32.totalorder %s178, %s179
      %p190 = scmp.eq.s32.totalorder %s28, 0
      %p191 = por %p189, %p190
      %p192 = scmp.ne.s32.totalorder %s178, %s179
      %p193 = scmp.eq.s32.totalorder %s29, 1
      %p194 = por %p192, %p193
      %p196 = scmp.ne.s32.totalorder %s179, %s195
      %p197 = scmp.eq.s32.totalorder %s29, 0
      %p198 = por %p196, %p197
      %s200 = sadd.s32 %s199, 1
      %p203 = scmp.eq.s32.totalorder %s23, 1
      %p204 = scmp.ne.s32.totalorder %s199, %s201
      %p205 = scmp.eq.s32.totalorder %s23, 0
      %p206 = por %p204, %p205
      %p207 = scmp.ne.s32.totalorder %s199, %s201
      %p208 = scmp.eq.s32.totalorder %s28, 1
      %p209 = por %p207, %p208
      %p210 = scmp.ne.s32.totalorder %s201, %s202
      %p211 = scmp.eq.s32.totalorder %s28, 0
      %p212 = por %p210, %p211
      %p213 = scmp.ne.s32.totalorder %s201, %s202
      %p214 = scmp.eq.s32.totalorder %s29, 1
      %p215 = por %p213, %p214
      %p217 = scmp.ne.s32.totalorder %s202, %s216
      %p218 = scmp.eq.s32.totalorder %s29, 0
      %p219 = por %p217, %p218
      %s220 = ssub.s32 %s30, %s42
      %p221 = scmp.eq.s32.totalorder %s220, 0
      %s223 = sadd.s32 %s222, 1
      %s224 = scalar_select %p221, %s222, %s223
      %p227 = pneg %p221
      %p228 = scmp.eq.s32.totalorder %s23, 1
      %p229 = por %p227, %p228
      %p230 = scmp.ne.s32.totalorder %s222, %s225
      %p231 = scmp.eq.s32.totalorder %s23, 0
      %p232 = por %p230, %p231
      %p233 = scmp.ne.s32.totalorder %s222, %s225
      %p234 = scmp.eq.s32.totalorder %s28, 1
      %p235 = por %p233, %p234
      %p236 = scmp.ne.s32.totalorder %s225, %s226
      %p237 = scmp.eq.s32.totalorder %s28, 0
      %p238 = por %p236, %p237
      %p239 = scmp.ne.s32.totalorder %s225, %s226
      %p240 = scmp.eq.s32.totalorder %s29, 1
      %p241 = por %p239, %p240
      %p243 = scmp.ne.s32.totalorder %s226, %s242
      %p244 = scmp.eq.s32.totalorder %s29, 0
      %p245 = por %p243, %p244
      %p246 = scmp.le.s32.totalorder 1, %s23
      %p247 = scmp.lt.s32.totalorder %s23, 3
      %p248 = pnand %p246, %p247
      %p249 = pneg %p248
      // Predicated region
      $region9: #{tpu_custom_call.1} parent=5 // pred_check
        _
      $region10: #{tpu_custom_call.1} parent=5 // pred_check_branch
        %251 = sbr.rel (%p248) target = $region12
      $region11: #{tpu_custom_call.1} parent=5 // pred_region
        %s252 = ssub.s32 %s23, 1
        // Predicated region
        $region13: #{tpu_custom_call.1} parent=11 // pred_check
          %p253 = pneg %p139
        $region14: #{tpu_custom_call.1} parent=11 // pred_check_branch
          %255 = sbr.rel (%p253) target = $region16
        $region15: #{tpu_custom_call.1} parent=11 // pred_region
          %257 = vsyncadd [#allocation10], 0
          %s258 = smul.addr %s33, 4
          %s259 = smul.addr %s258, 4
          %s260 = scalar_lea.hbm %s3, %s259
          %s261 = sshll.u32 %s260, 4
          %s262 = int_to_ptr.hbm [resolvable:$true] %s261
          %s263 = sshll.u32 [#allocation9], 4
          %s264 = int_to_ptr.vmem [resolvable:$true] %s263
          %269 = dma.hbm_to_vmem [thread:$0]  %s262, 256, %s264, [#allocation10], 64, 64, 4
        $region16: #{tpu_custom_call.1} parent=11 // pred_fallthru
          _
        // Predicated region
        $region17: #{tpu_custom_call.1} parent=11 // pred_check
          %p270 = pneg %p165
        $region18: #{tpu_custom_call.1} parent=11 // pred_check_branch
          %272 = sbr.rel (%p270) target = $region20
        $region19: #{tpu_custom_call.1} parent=11 // pred_region
          %p273 = scmp.lt.s32.totalorder %s33, 0
          %s274 = scalar_select %p273, %s33, 0
          %s275 = scalar_lea.vmem %s4, %s274
        $region20: #{tpu_custom_call.1} parent=11 // pred_fallthru
          _
        // Predicated region
        $region21: #{tpu_custom_call.1} parent=11 // pred_check
          %p276 = pneg %p191
        $region22: #{tpu_custom_call.1} parent=11 // pred_check_branch
          %278 = sbr.rel (%p276) target = $region24
        $region23: #{tpu_custom_call.1} parent=11 // pred_region
          %280 = vsyncadd [#allocation10], 0
          %s281 = smul.addr %s33, 4
          %s282 = smul.addr %s281, 4
          %s283 = scalar_lea.hbm %s5, %s282
          %s284 = sshll.u32 %s283, 4
          %s285 = int_to_ptr.hbm [resolvable:$true] %s284
          %s286 = sshll.u32 [#allocation11], 4
          %s287 = int_to_ptr.vmem [resolvable:$true] %s286
          %292 = dma.hbm_to_vmem [thread:$0]  %s285, 256, %s287, [#allocation10], 64, 64, 4
        $region24: #{tpu_custom_call.1} parent=11 // pred_fallthru
          _
        // Predicated region
        $region25: #{tpu_custom_call.1} parent=11 // pred_check
          %p293 = pneg %p212
        $region26: #{tpu_custom_call.1} parent=11 // pred_check_branch
          %295 = sbr.rel (%p293) target = $region28
        $region27: #{tpu_custom_call.1} parent=11 // pred_region
          _
        $region28: #{tpu_custom_call.1} parent=11 // pred_fallthru
          _
      $region12: #{tpu_custom_call.1} parent=5 // pred_fallthru
        _
      %p296 = scmp.lt.s32.totalorder %s23, 2
      // Predicated region
      $region29: #{tpu_custom_call.1} parent=5 // pred_check
        %p297 = pneg %p296
      $region30: #{tpu_custom_call.1} parent=5 // pred_check_branch
        %299 = sbr.rel (%p297) target = $region32
      $region31: #{tpu_custom_call.1} parent=5 // pred_region
        // Predicated region
        $region33: #{tpu_custom_call.1} parent=31 // pred_check
          %p300 = pneg %p55
        $region34: #{tpu_custom_call.1} parent=31 // pred_check_branch
          %302 = sbr.rel (%p300) target = $region36
        $region35: #{tpu_custom_call.1} parent=31 // pred_region
          %s303 = sand.u32 %s45, 1
          %s304 = scalar_lea.sflag [#allocation4], %s303
          %s305 = sand.u32 %s45, 1
          %s306 = smul.addr %s305, 4
          %s307 = scalar_lea.vmem [#allocation3], %s306
          %309 = vsyncadd %s304, 0
          %s310 = smul.addr %s30, 4
          %s311 = scalar_lea.hbm %s0, %s310
          %s313 = sshll.u32 %s311, 4
          %s314 = int_to_ptr.hbm [resolvable:$true] %s313
          %s315 = sshll.u32 %s307, 4
          %s316 = int_to_ptr.vmem [resolvable:$true] %s315
          %318 = dma.hbm_to_vmem [thread:$0]  %s314, 64, %s316, %s304
        $region36: #{tpu_custom_call.1} parent=31 // pred_fallthru
          _
        // Predicated region
        $region37: #{tpu_custom_call.1} parent=31 // pred_check
          %p319 = pneg %p81
        $region38: #{tpu_custom_call.1} parent=31 // pred_check_branch
          %321 = sbr.rel (%p319) target = $region40
        $region39: #{tpu_custom_call.1} parent=31 // pred_region
          %s322 = sand.u32 %s23, 1
          %s323 = scalar_lea.sflag [#allocation7], %s322
          %s324 = sand.u32 %s71, 1
          %s325 = smul.addr %s324, 4
          %s326 = scalar_lea.vmem [#allocation6], %s325
          %328 = vsyncadd %s323, 0
          %s329 = smul.addr %s30, 4
          %s330 = scalar_lea.hbm %s1, %s329
          %s332 = sshll.u32 %s330, 4
          %s333 = int_to_ptr.hbm [resolvable:$true] %s332
          %s334 = sshll.u32 %s326, 4
          %s335 = int_to_ptr.vmem [resolvable:$true] %s334
          %337 = dma.hbm_to_vmem [thread:$0]  %s333, 64, %s335, %s323
        $region40: #{tpu_custom_call.1} parent=31 // pred_fallthru
          _
        // Predicated region
        $region41: #{tpu_custom_call.1} parent=31 // pred_check
          %p338 = pneg %p107
        $region42: #{tpu_custom_call.1} parent=31 // pred_check_branch
          %340 = sbr.rel (%p338) target = $region44
        $region43: #{tpu_custom_call.1} parent=31 // pred_region
          %s341 = sand.u32 %s23, 1
          %s342 = scalar_lea.sflag [#allocation7], %s341
          %s343 = sand.u32 %s97, 1
          %s344 = smul.addr %s343, 4
          %s345 = scalar_lea.vmem [#allocation8], %s344
          %347 = vsyncadd %s342, 0
          %s348 = smul.addr %s30, 4
          %s349 = scalar_lea.hbm %s2, %s348
          %s351 = sshll.u32 %s349, 4
          %s352 = int_to_ptr.hbm [resolvable:$true] %s351
          %s353 = sshll.u32 %s345, 4
          %s354 = int_to_ptr.vmem [resolvable:$true] %s353
          %356 = dma.hbm_to_vmem [thread:$0]  %s352, 64, %s354, %s342
        $region44: #{tpu_custom_call.1} parent=31 // pred_fallthru
          _
      $region32: #{tpu_custom_call.1} parent=5 // pred_fallthru
        _
      %p357 = scmp.le.s32.totalorder 1, %s23
      %p358 = scmp.lt.s32.totalorder %s23, 3
      %p359 = pnand %p357, %p358
      %p360 = pneg %p359
      // Predicated region
      $region45: #{tpu_custom_call.1} parent=5 // pred_check
        _
      $region46: #{tpu_custom_call.1} parent=5 // pred_check_branch
        %362 = sbr.rel (%p359) target = $region48
      $region47: #{tpu_custom_call.1} parent=5 // pred_region
        %s363 = ssub.s32 %s23, 1
        %s364 = sand.u32 %s48, 1
        %s365 = scalar_lea.sflag [#allocation4], %s364
        %s366 = sand.u32 %s48, 1
        %s367 = smul.addr %s366, 4
        %s368 = scalar_lea.vmem [#allocation3], %s367
        // Predicated region
        $region49: #{tpu_custom_call.1} parent=47 // pred_check
          %p369 = pneg %p61
        $region50: #{tpu_custom_call.1} parent=47 // pred_check_branch
          %371 = sbr.rel (%p369) target = $region52
        $region51: #{tpu_custom_call.1} parent=47 // pred_region
          %373 = dma.done %s365, 64
        $region52: #{tpu_custom_call.1} parent=47 // pred_fallthru
          _
        %s374 = sand.u32 %s28, 1
        %s375 = scalar_lea.sflag [#allocation7], %s374
        %s376 = sand.u32 %s74, 1
        %s377 = smul.addr %s376, 4
        %s378 = scalar_lea.vmem [#allocation6], %s377
        // Predicated region
        $region53: #{tpu_custom_call.1} parent=47 // pred_check
          %p379 = pneg %p87
        $region54: #{tpu_custom_call.1} parent=47 // pred_check_branch
          %381 = sbr.rel (%p379) target = $region56
        $region55: #{tpu_custom_call.1} parent=47 // pred_region
          %383 = dma.done %s375, 64
        $region56: #{tpu_custom_call.1} parent=47 // pred_fallthru
          _
        %s384 = sand.u32 %s28, 1
        %s385 = scalar_lea.sflag [#allocation7], %s384
        %s386 = sand.u32 %s100, 1
        %s387 = smul.addr %s386, 4
        %s388 = scalar_lea.vmem [#allocation8], %s387
        // Predicated region
        $region57: #{tpu_custom_call.1} parent=47 // pred_check
          %p389 = pneg %p113
        $region58: #{tpu_custom_call.1} parent=47 // pred_check_branch
          %391 = sbr.rel (%p389) target = $region60
        $region59: #{tpu_custom_call.1} parent=47 // pred_region
          %393 = dma.done %s385, 64
        $region60: #{tpu_custom_call.1} parent=47 // pred_fallthru
          _
        // Predicated region
        $region61: #{tpu_custom_call.1} parent=47 // pred_check
          %p394 = pneg %p139
        $region62: #{tpu_custom_call.1} parent=47 // pred_check_branch
          %396 = sbr.rel (%p394) target = $region64
        $region63: #{tpu_custom_call.1} parent=47 // pred_region
          %398 = dma.done [#allocation10], 256
        $region64: #{tpu_custom_call.1} parent=47 // pred_fallthru
          _
        // Predicated region
        $region65: #{tpu_custom_call.1} parent=47 // pred_check
          %p399 = pneg %p191
        $region66: #{tpu_custom_call.1} parent=47 // pred_check_branch
          %401 = sbr.rel (%p399) target = $region68
        $region67: #{tpu_custom_call.1} parent=47 // pred_region
          %403 = dma.done [#allocation10], 256
        $region68: #{tpu_custom_call.1} parent=47 // pred_fallthru
          _
        %s404 = sand.u32 %s48, 1
        %s405 = scalar_lea.sflag [#allocation4], %s404
        %s406 = sand.u32 %s48, 1
        %s407 = smul.addr %s406, 4
        %s408 = scalar_lea.vmem [#allocation3], %s407
        %p409 = pneg %p61
        %p410 = pneg %p58
        %s411 = sand.u32 %s28, 1
        %s412 = scalar_lea.sflag [#allocation7], %s411
        %s413 = sand.u32 %s74, 1
        %s414 = smul.addr %s413, 4
        %s415 = scalar_lea.vmem [#allocation6], %s414
        %p416 = pneg %p87
        %p417 = pneg %p84
        %s418 = sand.u32 %s28, 1
        %s419 = scalar_lea.sflag [#allocation7], %s418
        %s420 = sand.u32 %s100, 1
        %s421 = smul.addr %s420, 4
        %s422 = scalar_lea.vmem [#allocation8], %s421
        %p423 = pneg %p113
        %p424 = pneg %p110
        %p425 = pneg %p139
        %p426 = pneg %p136
        %p427 = scmp.lt.s32.totalorder %s33, 0
        %s428 = scalar_select %p427, %s33, 0
        %s429 = scalar_lea.vmem %s4, %s428
        %p430 = pneg %p165
        %p431 = pneg %p162
        %p432 = pneg %p191
        %p433 = pneg %p188
        %p434 = pneg %p212
        %p435 = pneg %p209
        %p436 = pneg %p238
        %p437 = pneg %p235
        %s438 = sand.u32 %s225, 1
        %s439 = scalar_lea.sflag [#allocation5], %s438
        %s440 = sand.u32 %s225, 1
        %s441 = smul.addr %s440, 8
        %s442 = scalar_lea.vmem [#allocation12], %s441
        %p443 = scmp.lt.s32.totalorder %s33, 0
        %s444 = scalar_select %p443, %s33, 0
        %s445 = scalar_lea.vmem %s4, %s444
        %v447 = vld [vmem:[%s368] sm:$0xf]
        %v448 = vld [vmem:[#allocation9] sm:$0xf]
        %v449 = vld [vmem:[#allocation9 + $0x4] sm:$0xf]
        %v450 = vld [vmem:[#allocation9 + $0x8] sm:$0xf]
        %v451 = vld [vmem:[#allocation9 + $0xc] sm:$0xf]
        %v452 = vld [vmem:[%s445] sm:$0x1]
        %v454 = vperm.slane %v452, 0
        %v460 = vunpack.c.l.b16 %v448
        %v461 = vunpack.c.l.b16 %v449
        %v462 = vunpack.c.l.b16 %v450
        %v463 = vunpack.c.l.b16 %v451
        %v464 = vpack.c.b16 %v461, %v460
        %v465 = vpack.c.b16 %v463, %v462
        %vm468 = vcmask 261120
        %v470 = vsel %vm468, %v447, 0
        %472 = vmatpush.bf16.msra.mxu0 0
        %473 = vmatpush.bf16.msra.mxu0 0
        %474 = vmatpush.bf16.msra.mxu0 0
        %475 = vmatpush.bf16.msra.mxu0 0
        %476 = vmatpush.bf16.msra.mxu0 0
        %477 = vmatpush.bf16.msra.mxu0 0
        %478 = vmatpush.bf16.msra.mxu0 %v465
        %479 = vmatpush.bf16.msra.mxu0 %v464
        %480 = vmatmul.bf16.gmra.mxu0 %v470
        %v481 = vpop.f32.mrf.mxu0
        %v482 = vadd.f32 %v454, %v481
        %v483 = vpop.f32.mrf.mxu0
        %484 = vdwg.mxu0
        %v485 = vpack.c.bf16 %v482, %v482
        %v486 = vld [vmem:[%s378] sm:$0xf]
        %vm487 = vcmask 64512
        %v489 = vsel %vm487, %v485, 0
        %vm491 = vcmask 1043456
        %v493 = vsel %vm491, %v486, 0
        %495 = vmatpush.bf16.msra.mxu0 0
        %496 = vmatpush.bf16.msra.mxu0 0
        %497 = vmatpush.bf16.msra.mxu0 0
        %498 = vmatpush.bf16.msra.mxu0 0
        %499 = vmatpush.bf16.msra.mxu0 0
        %500 = vmatpush.bf16.msra.mxu0 0
        %501 = vmatpush.bf16.msra.mxu0 0
        %502 = vmatpush.bf16.msra.mxu0 %v493
        %503 = vmatmul.bf16.gmra.mxu0 %v489
        %v504 = vpop.f32.mrf.mxu0
        %v505 = vadd.f32 0.0, %v504
        %v506 = vpop.f32.mrf.mxu0
        %507 = vdwg.mxu0
        %v508 = vsel %vm487, %v505, -inf
        %509 = vmax.xlane.f32.xlu0 %v508
        %v510 = vpop.xlane.xlu0 %509
        %v511 = vsub.f32 %v505, %v510
        %v512 = vmul.f32 %v511, 1.442695
        %v513 = vpow.pop %v512
        %v514 = vsel %vm487, %v513, 0.0
        %515 = vadd.xlane.f32.xlu0 %v514
        %v516 = vpop.xlane.xlu0 %515
        %v517 = vpack.c.bf16 %v513, %v513
        %v518 = vld [vmem:[%s388] sm:$0xf]
        %v520 = vsel %vm487, %v517, 0
        %v523 = vsel %vm491, %v518, 0
        %525 = vmatpush.bf16.msra.mxu0 0
        %526 = vmatpush.bf16.msra.mxu0 0
        %527 = vmatpush.bf16.msra.mxu0 0
        %528 = vmatpush.bf16.msra.mxu0 0
        %529 = vmatpush.bf16.msra.mxu0 0
        %530 = vmatpush.bf16.msra.mxu0 0
        %531 = vmatpush.bf16.msra.mxu0 0
        %532 = vmatpush.bf16.msra.mxu0 %v523
        %533 = vmatmul.bf16.gmra.mxu0 %v520
        %v534 = vpop.f32.mrf.mxu0
        %v535 = vadd.f32 0.0, %v534
        %v536 = vpop.f32.mrf.mxu0
        %537 = vdwg.mxu0
        %v538 = vrcp.pop %v516
        %v539 = vmul.f32 %v535, %v538
        %v540 = vpack.c.bf16 %v539, %v539
        %vm541 = vcmask 60416
        %542 = vst.msk [vmem:[#allocation2] sm:$0xf] %vm541, %v540
        %v543 = vld [vmem:[%s378] sm:$0xf]
        %v545 = vunpack.c.l.b16 %v485
        %v546 = vpack.c.b16 %v545, %v545
        %547 = vrot.lane.b32.xlu0 %v546, 120
        %v548 = vpop.permute.xlu0 %547
        %v550 = vsel %vm487, %v548, 0
        %v553 = vsel %vm491, %v543, 0
        %555 = vmatpush.bf16.msra.mxu0 0
        %556 = vmatpush.bf16.msra.mxu0 0
        %557 = vmatpush.bf16.msra.mxu0 0
        %558 = vmatpush.bf16.msra.mxu0 0
        %559 = vmatpush.bf16.msra.mxu0 0
        %560 = vmatpush.bf16.msra.mxu0 0
        %561 = vmatpush.bf16.msra.mxu0 0
        %562 = vmatpush.bf16.msra.mxu0 %v553
        %563 = vmatmul.bf16.gmra.mxu0 %v550
        %v564 = vpop.f32.mrf.mxu0
        %v565 = vadd.f32 0.0, %v564
        %v566 = vpop.f32.mrf.mxu0
        %567 = vdwg.mxu0
        %v568 = vsel %vm487, %v565, -inf
        %569 = vmax.xlane.f32.xlu0 %v568
        %v570 = vpop.xlane.xlu0 %569
        %v571 = vsub.f32 %v565, %v570
        %v572 = vmul.f32 %v571, 1.442695
        %v573 = vpow.pop %v572
        %v574 = vsel %vm487, %v573, 0.0
        %575 = vadd.xlane.f32.xlu0 %v574
        %v576 = vpop.xlane.xlu0 %575
        %v577 = vpack.c.bf16 %v573, %v573
        %v578 = vld [vmem:[%s388] sm:$0xf]
        %v580 = vsel %vm487, %v577, 0
        %v583 = vsel %vm491, %v578, 0
        %585 = vmatpush.bf16.msra.mxu0 0
        %586 = vmatpush.bf16.msra.mxu0 0
        %587 = vmatpush.bf16.msra.mxu0 0
        %588 = vmatpush.bf16.msra.mxu0 0
        %589 = vmatpush.bf16.msra.mxu0 0
        %590 = vmatpush.bf16.msra.mxu0 0
        %591 = vmatpush.bf16.msra.mxu0 0
        %592 = vmatpush.bf16.msra.mxu0 %v583
        %593 = vmatmul.bf16.gmra.mxu0 %v580
        %v594 = vpop.f32.mrf.mxu0
        %v595 = vadd.f32 0.0, %v594
        %v596 = vpop.f32.mrf.mxu0
        %597 = vdwg.mxu0
        %v598 = vrcp.pop %v576
        %v599 = vmul.f32 %v595, %v598
        %v600 = vpack.c.bf16 %v599, %v599
        %602 = vrot.lane.b32.xlu0 %v600, 8
        %v603 = vpop.permute.xlu0 %602
        %vm605 = vcmask 126016
        %606 = vst.msk [vmem:[#allocation2] sm:$0xf] %vm605, %v603
        %v607 = vld [vmem:[%s378] sm:$0xf]
        %608 = vrot.lane.b32.xlu0 %v546, 112
        %v609 = vpop.permute.xlu0 %608
        %v611 = vsel %vm487, %v609, 0
        %v614 = vsel %vm491, %v607, 0
        %616 = vmatpush.bf16.msra.mxu0 0
        %617 = vmatpush.bf16.msra.mxu0 0
        %618 = vmatpush.bf16.msra.mxu0 0
        %619 = vmatpush.bf16.msra.mxu0 0
        %620 = vmatpush.bf16.msra.mxu0 0
        %621 = vmatpush.bf16.msra.mxu0 0
        %622 = vmatpush.bf16.msra.mxu0 0
        %623 = vmatpush.bf16.msra.mxu0 %v614
        %624 = vmatmul.bf16.gmra.mxu0 %v611
        %v625 = vpop.f32.mrf.mxu0
        %v626 = vadd.f32 0.0, %v625
        %v627 = vpop.f32.mrf.mxu0
        %628 = vdwg.mxu0
        %v629 = vsel %vm487, %v626, -inf
        %630 = vmax.xlane.f32.xlu0 %v629
        %v631 = vpop.xlane.xlu0 %630
        %v632 = vsub.f32 %v626, %v631
        %v633 = vmul.f32 %v632, 1.442695
        %v634 = vpow.pop %v633
        %v635 = vsel %vm487, %v634, 0.0
        %636 = vadd.xlane.f32.xlu0 %v635
        %v637 = vpop.xlane.xlu0 %636
        %v638 = vpack.c.bf16 %v634, %v634
        %v639 = vld [vmem:[%s388] sm:$0xf]
        %v641 = vsel %vm487, %v638, 0
        %v644 = vsel %vm491, %v639, 0
        %646 = vmatpush.bf16.msra.mxu0 0
        %647 = vmatpush.bf16.msra.mxu0 0
        %648 = vmatpush.bf16.msra.mxu0 0
        %649 = vmatpush.bf16.msra.mxu0 0
        %650 = vmatpush.bf16.msra.mxu0 0
        %651 = vmatpush.bf16.msra.mxu0 0
        %652 = vmatpush.bf16.msra.mxu0 0
        %653 = vmatpush.bf16.msra.mxu0 %v644
        %654 = vmatmul.bf16.gmra.mxu0 %v641
        %v655 = vpop.f32.mrf.mxu0
        %v656 = vadd.f32 0.0, %v655
        %v657 = vpop.f32.mrf.mxu0
        %658 = vdwg.mxu0
        %v659 = vrcp.pop %v637
        %v660 = vmul.f32 %v656, %v659
        %v661 = vpack.c.bf16 %v660, %v660
        %663 = vrot.lane.b32.xlu0 %v661, 16
        %v664 = vpop.permute.xlu0 %663
        %vm666 = vcmask 191616
        %667 = vst.msk [vmem:[#allocation2] sm:$0xf] %vm666, %v664
        %v668 = vld [vmem:[%s378] sm:$0xf]
        %669 = vrot.lane.b32.xlu0 %v546, 104
        %v670 = vpop.permute.xlu0 %669
        %v672 = vsel %vm487, %v670, 0
        %v675 = vsel %vm491, %v668, 0
        %677 = vmatpush.bf16.msra.mxu0 0
        %678 = vmatpush.bf16.msra.mxu0 0
        %679 = vmatpush.bf16.msra.mxu0 0
        %680 = vmatpush.bf16.msra.mxu0 0
        %681 = vmatpush.bf16.msra.mxu0 0
        %682 = vmatpush.bf16.msra.mxu0 0
        %683 = vmatpush.bf16.msra.mxu0 0
        %684 = vmatpush.bf16.msra.mxu0 %v675
        %685 = vmatmul.bf16.gmra.mxu0 %v672
        %v686 = vpop.f32.mrf.mxu0
        %v687 = vadd.f32 0.0, %v686
        %v688 = vpop.f32.mrf.mxu0
        %689 = vdwg.mxu0
        %v690 = vsel %vm487, %v687, -inf
        %691 = vmax.xlane.f32.xlu0 %v690
        %v692 = vpop.xlane.xlu0 %691
        %v693 = vsub.f32 %v687, %v692
        %v694 = vmul.f32 %v693, 1.442695
        %v695 = vpow.pop %v694
        %v696 = vsel %vm487, %v695, 0.0
        %697 = vadd.xlane.f32.xlu0 %v696
        %v698 = vpop.xlane.xlu0 %697
        %v699 = vpack.c.bf16 %v695, %v695
        %v700 = vld [vmem:[%s388] sm:$0xf]
        %v702 = vsel %vm487, %v699, 0
        %v705 = vsel %vm491, %v700, 0
        %707 = vmatpush.bf16.msra.mxu0 0
        %708 = vmatpush.bf16.msra.mxu0 0
        %709 = vmatpush.bf16.msra.mxu0 0
        %710 = vmatpush.bf16.msra.mxu0 0
        %711 = vmatpush.bf16.msra.mxu0 0
        %712 = vmatpush.bf16.msra.mxu0 0
        %713 = vmatpush.bf16.msra.mxu0 0
        %714 = vmatpush.bf16.msra.mxu0 %v705
        %715 = vmatmul.bf16.gmra.mxu0 %v702
        %v716 = vpop.f32.mrf.mxu0
        %v717 = vadd.f32 0.0, %v716
        %v718 = vpop.f32.mrf.mxu0
        %719 = vdwg.mxu0
        %v720 = vrcp.pop %v698
        %v721 = vmul.f32 %v717, %v720
        %v722 = vpack.c.bf16 %v721, %v721
        %724 = vrot.lane.b32.xlu0 %v722, 24
        %v725 = vpop.permute.xlu0 %724
        %vm727 = vcmask 257216
        %728 = vst.msk [vmem:[#allocation2] sm:$0xf] %vm727, %v725
        %v729 = vld [vmem:[#allocation2] sm:$0xf]
        %v730 = vld [vmem:[#allocation11] sm:$0xf]
        %v731 = vld [vmem:[#allocation11 + $0x4] sm:$0xf]
        %v732 = vld [vmem:[#allocation11 + $0x8] sm:$0xf]
        %v733 = vld [vmem:[#allocation11 + $0xc] sm:$0xf]
        %v738 = vunpack.c.l.b16 %v730
        %v739 = vunpack.c.l.b16 %v731
        %v740 = vunpack.c.l.b16 %v732
        %v741 = vunpack.c.l.b16 %v733
        %v742 = vpack.c.b16 %v739, %v738
        %v743 = vpack.c.b16 %v741, %v740
        %v747 = vsel %vm468, %v729, 0
        %749 = vmatpush.bf16.msra.mxu0 0
        %750 = vmatpush.bf16.msra.mxu0 0
        %751 = vmatpush.bf16.msra.mxu0 0
        %752 = vmatpush.bf16.msra.mxu0 0
        %753 = vmatpush.bf16.msra.mxu0 0
        %754 = vmatpush.bf16.msra.mxu0 0
        %755 = vmatpush.bf16.msra.mxu0 %v743
        %756 = vmatpush.bf16.msra.mxu0 %v742
        %757 = vmatmul.bf16.gmra.mxu0 %v747
        %v758 = vpop.f32.mrf.mxu0
        %v759 = vadd.f32 0.0, %v758
        %v760 = vpop.f32.mrf.mxu0
        %761 = vdwg.mxu0
        %v762 = vld [vmem:[%s6] sm:$0x1]
        %v764 = vperm.slane %v762, 0
        %v766 = vadd.f32 %v759, %v764
        %767 = vst.msk [vmem:[%s442] sm:$0xff] %vm468, %v766
        %s768 = sand.u32 %s225, 1
        %s769 = scalar_lea.sflag [#allocation5], %s768
        %s770 = sand.u32 %s225, 1
        %s771 = smul.addr %s770, 8
        %s772 = scalar_lea.vmem [#allocation12], %s771
        // Predicated region
        $region69: #{tpu_custom_call.1} parent=47 // pred_check
          %p773 = pneg %p235
        $region70: #{tpu_custom_call.1} parent=47 // pred_check_branch
          %775 = sbr.rel (%p773) target = $region72
        $region71: #{tpu_custom_call.1} parent=47 // pred_region
          %777 = vsyncadd %s769, 0
          %s778 = smul.addr %s32, 8
          %s779 = scalar_lea.hbm %s7, %s778
          %s781 = sshll.u32 %s772, 4
          %s782 = int_to_ptr.vmem [resolvable:$true] %s781
          %s783 = sshll.u32 %s779, 4
          %s784 = int_to_ptr.hbm [resolvable:$true] %s783
          %786 = dma.vmem_to_hbm [thread:$0]  %s782, 128, %s784, %s769
        $region72: #{tpu_custom_call.1} parent=47 // pred_fallthru
          _
      $region48: #{tpu_custom_call.1} parent=5 // pred_fallthru
        _
      %p787 = scmp.le.s32.totalorder 2, %s23
      // Predicated region
      $region73: #{tpu_custom_call.1} parent=5 // pred_check
        %p788 = pneg %p787
      $region74: #{tpu_custom_call.1} parent=5 // pred_check_branch
        %790 = sbr.rel (%p788) target = $region76
      $region75: #{tpu_custom_call.1} parent=5 // pred_region
        %s791 = ssub.s32 %s23, 2
        // Predicated region
        $region77: #{tpu_custom_call.1} parent=75 // pred_check
          %p792 = pneg %p241
        $region78: #{tpu_custom_call.1} parent=75 // pred_check_branch
          %794 = sbr.rel (%p792) target = $region80
        $region79: #{tpu_custom_call.1} parent=75 // pred_region
          %s795 = sand.u32 %s226, 1
          %s796 = scalar_lea.sflag [#allocation5], %s795
          %s797 = sand.u32 %s226, 1
          %s798 = smul.addr %s797, 8
          %s799 = scalar_lea.vmem [#allocation12], %s798
          %801 = dma.done %s796, 128
        $region80: #{tpu_custom_call.1} parent=75 // pred_fallthru
          _
      $region76: #{tpu_custom_call.1} parent=5 // pred_fallthru
        _
    $region6: #{tpu_custom_call.1} parent=1 // loop_footer
      %s27 = sadd.s32 1, %s23
    $region7: #{tpu_custom_call.1} parent=1 // loop_footer_branch
      %22 = sbr.rel target = $region3
    $region8: #{tpu_custom_call.1} parent=1 // loop_exit
      _
    %802 = vsyncpa [#allocation4], 1
    %s803 = scalar_lea.sflag [#allocation4], 1
    %804 = vsyncpa %s803, 1
    %805 = vsyncpa [#allocation7], 1
    %s806 = scalar_lea.sflag [#allocation7], 1
    %807 = vsyncpa %s806, 1
    %808 = vsyncpa [#allocation10], 1
    %809 = vsyncpa [#allocation5], 1
    %s810 = scalar_lea.sflag [#allocation5], 1
    %811 = vsyncpa %s810, 1

</llo_original>
